<compile_context>
chip_gen: v5e
topology: v5e:2x2
jax: 0.10.0
libtpu: 0.0.40
codegen_flags: <defaults>
</compile_context>

<pallas_src>
import functools

import jax
import jax.numpy as jnp
from jax.experimental import pallas as pl
from jax.experimental.pallas import tpu as pltpu

# Polynomial coefficients from the PyTorch module.
_COEFFS = {
    2: (0.1992, 0.5002, 0.1997, 0.0),
    3: (0.1995, 0.5002, 0.1994, 0.0164),
}

_LANES = 128


def _act_poly_kernel(x_ref, o_ref, *, degree):
    c0, c1, c2, c3 = _COEFFS[degree]
    x = x_ref[...].astype(jnp.float32)
    # Horner form: 3 mults for degree 3, 2 for degree 2.
    if degree == 3:
        out = c0 + x * (c1 + x * (c2 + c3 * x))
    else:
        out = c0 + x * (c1 + c2 * x)
    o_ref[...] = out.astype(o_ref.dtype)


def act_poly(x, degree, *, tile_rows=1024, donate_input=False):
    """Elementwise polynomial activation, matching the PyTorch act_poly module."""
    if degree not in (2, 3):
        raise ValueError("degree must be 2 or 3")

    orig_shape = x.shape
    orig_dtype = x.dtype

    flat = x.reshape(-1)
    n = flat.shape[0]

    # Build a lane-dense (rows, 128) view.  Only pad when numel is not a
    # multiple of 128 (rare; at most 127 elements of padding).
    if n % _LANES == 0:
        rows = n // _LANES
        padded = False
    else:
        rows = pl.cdiv(n, _LANES)
        flat = jnp.pad(flat, (0, rows * _LANES - n))
        padded = True
    x2d = flat.reshape(rows, _LANES)

    # Sublane multiple: 8 for 32-bit dtypes, 16 for sub-32-bit (bf16 packs
    # [16, 128] per vreg) so stores stay unmasked.
    sub = 8 if jnp.dtype(orig_dtype).itemsize >= 4 else 16
    rows_up = ((rows + sub - 1) // sub) * sub

    block_rows = min(tile_rows, rows_up)
    # Keep at least 2 grid steps when possible so v7x's two TensorCores both
    # get work ("parallel" grid axis is sharded across cores).
    if rows_up >= 2 * sub:
        half = ((pl.cdiv(rows, 2) + sub - 1) // sub) * sub
        block_rows = min(block_rows, half)
    block_rows = max(sub, (block_rows // sub) * sub)
    if rows < sub:
        # Tiny tensor: block must equal the full array extent.
        block_rows = rows

    grid = (pl.cdiv(rows, block_rows),)

    call_kwargs = {}
    if donate_input:
        # Caller promises not to reuse `x`; write the result in place in HBM.
        call_kwargs["input_output_aliases"] = {0: 0}

    out2d = pl.pallas_call(
        functools.partial(_act_poly_kernel, degree=degree),
        out_shape=jax.ShapeDtypeStruct((rows, _LANES), orig_dtype),
        grid=grid,
        in_specs=[pl.BlockSpec((block_rows, _LANES), lambda i: (i, 0))],
        out_specs=pl.BlockSpec((block_rows, _LANES), lambda i: (i, 0)),
        compiler_params=pltpu.CompilerParams(
            dimension_semantics=("parallel",)
        ),
        **call_kwargs,
    )(x2d)

    if padded:
        return out2d.reshape(-1)[:n].reshape(orig_shape)
    return out2d.reshape(orig_shape)


def _act_poly_ref(x, degree):
    c0, c1, c2, c3 = _COEFFS[degree]
    xf = x.astype(jnp.float32)
    if degree == 2:
        out = c0 + c1 * xf + c2 * xf * xf
    else:
        out = c0 + c1 * xf + c2 * xf * xf + c3 * xf * xf * xf
    return out.astype(x.dtype)


if __name__ == "__main__":
    key = jax.random.PRNGKey(0)
    ok = True

    # Main NCHW case: numel is a multiple of 128 -> no-pad fast path.
    x = jax.random.normal(key, (2, 4, 16, 16), dtype=jnp.float32)
    for degree in (2, 3):
        out = jax.block_until_ready(act_poly(x, degree))
        ref = _act_poly_ref(x, degree)
        if out.shape != x.shape or out.dtype != x.dtype:
            ok = False
        if not jnp.allclose(out, ref, atol=1e-5, rtol=1e-5):
            ok = False

    # Ragged case: numel not a multiple of 128 -> exercises the pad path.
    xr = jax.random.normal(jax.random.PRNGKey(1), (3, 5, 7), dtype=jnp.float32)
    out_r = jax.block_until_ready(act_poly(xr, 3))
    ref_r = _act_poly_ref(xr, 3)
    if out_r.shape != xr.shape or not jnp.allclose(out_r, ref_r, atol=1e-5, rtol=1e-5):
        ok = False

    # bf16 case: f32 compute inside the kernel, cast on store.
    xb = jax.random.normal(jax.random.PRNGKey(2), (2, 4, 16, 16), dtype=jnp.bfloat16)
    out_b = jax.block_until_ready(act_poly(xb, 2))
    ref_b = _act_poly_ref(xb, 2)
    if out_b.dtype != jnp.bfloat16 or not jnp.allclose(
        out_b.astype(jnp.float32), ref_b.astype(jnp.float32), atol=1e-2, rtol=1e-2
    ):
        ok = False

    if ok:
        print("KERNEL_OK")
</pallas_src>

<mosaic_0001>
module attributes {stable_mosaic.version = 11 : i64} {
  func.func @_act_poly_kernel(%arg0: i32, %arg1: memref<8x128xf32, #tpu.memory_space<vmem>>, %arg2: memref<8x128xf32, #tpu.memory_space<vmem>>) attributes {dimension_semantics = [#tpu.dimension_semantics<parallel>], iteration_bounds = array<i64: 2>, scalar_prefetch = 0 : i64, scratch_operands = 0 : i64, tpu.core_type = #tpu.core_type<tc>, window_params = [{transform_indices = @transform_0, window_bounds = array<i64: 8, 128>}, {transform_indices = @transform_1, window_bounds = array<i64: 8, 128>}]} {
    %c0 = arith.constant 0 : index
    %c0_0 = arith.constant 0 : index
    %0 = vector.load %arg1[%c0, %c0_0] : memref<8x128xf32, #tpu.memory_space<vmem>>, vector<8x128xf32>
    %cst = arith.constant 1.997000e-01 : f32
    %1 = vector.broadcast %cst : f32 to vector<8x128xf32>
    %2 = arith.mulf %1, %0 : vector<8x128xf32>
    %cst_1 = arith.constant 5.002000e-01 : f32
    %3 = vector.broadcast %cst_1 : f32 to vector<8x128xf32>
    %4 = arith.addf %3, %2 : vector<8x128xf32>
    %5 = arith.mulf %0, %4 : vector<8x128xf32>
    %cst_2 = arith.constant 1.992000e-01 : f32
    %6 = vector.broadcast %cst_2 : f32 to vector<8x128xf32>
    %7 = arith.addf %6, %5 : vector<8x128xf32>
    %c0_3 = arith.constant 0 : index
    %c0_4 = arith.constant 0 : index
    %8 = vector.load %arg2[%c0_3, %c0_4] : memref<8x128xf32, #tpu.memory_space<vmem>>, vector<8x128xf32>
    tpu.vector_store %arg2[%c0_3, %c0_4], %7 {strides = array<i32>} : memref<8x128xf32, #tpu.memory_space<vmem>>, vector<8x128xf32>,
    return
  }
  func.func @transform_0(%arg0: i32) -> (i32, i32) {
    %c0_i32 = arith.constant 0 : i32
    %c0_i32_0 = arith.constant 0 : i32
    return %arg0, %c0_i32 : i32, i32
  }
  func.func @transform_1(%arg0: i32) -> (i32, i32) {
    %c0_i32 = arith.constant 0 : i32
    %c0_i32_0 = arith.constant 0 : i32
    return %arg0, %c0_i32 : i32, i32
  }
}

</mosaic_0001>

<llo_original>
// kernel: tpu_custom_call.1
$region0: #{tpu_custom_call.1}
  #allocation0 [shape = 'u32[]', space=smem, size = 0x4, offset = 0x4, fixed_abs, tag = 'smem constant byte address 0x4 - core index']
  #allocation1 [shape = 'u32[72,128]{1,0:T(1,128)}', space=vmem, size = 0x9000, scoped, tag = 'internal scratch']
  %s0 = inlined_call_operand.hbm [shape: f32[16,128], index: 0, kind: input, shape index: {}]
  %s1 = inlined_call_operand.hbm [shape: f32[16,128], index: 1, kind: output, shape index: {}]
  %s2 = sld [smem:[#allocation0]]
  $region41: #{tpu_custom_call.1} parent=0
    _
  %s4 = ssub.s32 1, %s2
  %s5 = scalar_select 0, %s4, %s2
  $region1: #{tpu_custom_call.1} parent=0
    #allocation2 [shape = 'u8[8192]{0}', space=vmem, size = 0x2000, scoped, tag = 'input window, operand 0']
    #allocation3 [shape = 's32[2]{0}', space=sflag, size = 0x8, scoped, tag = 'scoped memory for tpu_custom_call.1']
    #allocation4 [shape = 's32[2]{0}', space=sflag, size = 0x8, scoped, tag = 'scoped memory for tpu_custom_call.1']
    #allocation5 [shape = 'u8[8192]{0}', space=vmem, size = 0x2000, scoped, tag = 'output window, operand 0']
    %6 = vsyncpa [#allocation3], 0
    %s7 = scalar_lea.sflag [#allocation3], 1
    %8 = vsyncpa %s7, 0
    %9 = vsyncpa [#allocation4], 0
    %s10 = scalar_lea.sflag [#allocation4], 1
    %11 = vsyncpa %s10, 0
    loop: start=0, step=1, limit=4
    $region2: #{tpu_custom_call.1} parent=1 // loop_pre_header
      _
    $region3: #{tpu_custom_call.1} parent=1 // loop_header
      %s13 = sphi 0, %s17
      %p14 = scmp.ge.s32.totalorder %s13, 4
      %s23 = sphi 0, %s25
      %s26 = sphi 0, %s23
      %s27 = sphi 0, %s26
      %s43 = sphi 0, %s27
      %s49 = sphi 0, %s51
      %s52 = sphi 0, %s49
      %s53 = sphi 0, %s52
      %s69 = sphi 0, %s53
    $region4: #{tpu_custom_call.1} parent=1 // loop_header_branch
      %16 = sbr.rel (%p14) target = $region8
    $region5: #{tpu_custom_call.1} parent=1 // loop_body
      %s18 = ssub.s32 %s13, 1
      %s19 = ssub.s32 %s13, 2
      %s20 = sadd.s32 %s13, 1
      %s21 = ssub.s32 %s13, %s20
      %p22 = scmp.eq.s32.totalorder %s21, 0
      %s24 = sadd.s32 %s23, 1
      %s25 = scalar_select %p22, %s23, %s24
      %p28 = pneg %p22
      %p29 = scmp.eq.s32.totalorder %s13, 1
      %p30 = por %p28, %p29
      %p31 = scmp.ne.s32.totalorder %s23, %s26
      %p32 = scmp.eq.s32.totalorder %s13, 0
      %p33 = por %p31, %p32
      %p34 = scmp.ne.s32.totalorder %s23, %s26
      %p35 = scmp.eq.s32.totalorder %s18, 1
      %p36 = por %p34, %p35
      %p37 = scmp.ne.s32.totalorder %s26, %s27
      %p38 = scmp.eq.s32.totalorder %s18, 0
      %p39 = por %p37, %p38
      %p40 = scmp.ne.s32.totalorder %s26, %s27
      %p41 = scmp.eq.s32.totalorder %s19, 1
      %p42 = por %p40, %p41
      %p44 = scmp.ne.s32.totalorder %s27, %s43
      %p45 = scmp.eq.s32.totalorder %s19, 0
      %p46 = por %p44, %p45
      %s47 = ssub.s32 %s13, %s20
      %p48 = scmp.eq.s32.totalorder %s47, 0
      %s50 = sadd.s32 %s49, 1
      %s51 = scalar_select %p48, %s49, %s50
      %p54 = pneg %p48
      %p55 = scmp.eq.s32.totalorder %s13, 1
      %p56 = por %p54, %p55
      %p57 = scmp.ne.s32.totalorder %s49, %s52
      %p58 = scmp.eq.s32.totalorder %s13, 0
      %p59 = por %p57, %p58
      %p60 = scmp.ne.s32.totalorder %s49, %s52
      %p61 = scmp.eq.s32.totalorder %s18, 1
      %p62 = por %p60, %p61
      %p63 = scmp.ne.s32.totalorder %s52, %s53
      %p64 = scmp.eq.s32.totalorder %s18, 0
      %p65 = por %p63, %p64
      %p66 = scmp.ne.s32.totalorder %s52, %s53
      %p67 = scmp.eq.s32.totalorder %s19, 1
      %p68 = por %p66, %p67
      %p70 = scmp.ne.s32.totalorder %s53, %s69
      %p71 = scmp.eq.s32.totalorder %s19, 0
      %p72 = por %p70, %p71
      %p73 = scmp.le.s32.totalorder 1, %s13
      %p74 = scmp.lt.s32.totalorder %s13, 3
      %p75 = pnand %p73, %p74
      %p76 = pneg %p75
      // Predicated region
      $region9: #{tpu_custom_call.1} parent=5 // pred_check
        _
      $region10: #{tpu_custom_call.1} parent=5 // pred_check_branch
        %78 = sbr.rel (%p75) target = $region12
      $region11: #{tpu_custom_call.1} parent=5 // pred_region
        %s79 = ssub.s32 %s13, 1
      $region12: #{tpu_custom_call.1} parent=5 // pred_fallthru
        _
      %p80 = scmp.lt.s32.totalorder %s13, 2
      // Predicated region
      $region13: #{tpu_custom_call.1} parent=5 // pred_check
        %p81 = pneg %p80
      $region14: #{tpu_custom_call.1} parent=5 // pred_check_branch
        %83 = sbr.rel (%p81) target = $region16
      $region15: #{tpu_custom_call.1} parent=5 // pred_region
        // Predicated region
        $region17: #{tpu_custom_call.1} parent=15 // pred_check
          %p84 = pneg %p33
        $region18: #{tpu_custom_call.1} parent=15 // pred_check_branch
          %86 = sbr.rel (%p84) target = $region20
        $region19: #{tpu_custom_call.1} parent=15 // pred_region
          %s87 = sand.u32 %s23, 1
          %s88 = scalar_lea.sflag [#allocation3], %s87
          %s89 = sand.u32 %s23, 1
          %s90 = smul.addr %s89, 8
          %s91 = scalar_lea.vmem [#allocation2], %s90
          %93 = vsyncadd %s88, 0
          %s94 = smul.addr %s13, 8
          %s95 = scalar_lea.hbm %s0, %s94
          %s97 = sshll.u32 %s95, 4
          %s98 = int_to_ptr.hbm [resolvable:$true] %s97
          %s99 = sshll.u32 %s91, 4
          %s100 = int_to_ptr.vmem [resolvable:$true] %s99
          %102 = dma.hbm_to_vmem [thread:$0]  %s98, 128, %s100, %s88
        $region20: #{tpu_custom_call.1} parent=15 // pred_fallthru
          _
      $region16: #{tpu_custom_call.1} parent=5 // pred_fallthru
        _
      %p103 = scmp.le.s32.totalorder 1, %s13
      %p104 = scmp.lt.s32.totalorder %s13, 3
      %p105 = pnand %p103, %p104
      %p106 = pneg %p105
      // Predicated region
      $region21: #{tpu_custom_call.1} parent=5 // pred_check
        _
      $region22: #{tpu_custom_call.1} parent=5 // pred_check_branch
        %108 = sbr.rel (%p105) target = $region24
      $region23: #{tpu_custom_call.1} parent=5 // pred_region
        %s109 = ssub.s32 %s13, 1
        %s110 = sand.u32 %s26, 1
        %s111 = scalar_lea.sflag [#allocation3], %s110
        %s112 = sand.u32 %s26, 1
        %s113 = smul.addr %s112, 8
        %s114 = scalar_lea.vmem [#allocation2], %s113
        // Predicated region
        $region25: #{tpu_custom_call.1} parent=23 // pred_check
          %p115 = pneg %p39
        $region26: #{tpu_custom_call.1} parent=23 // pred_check_branch
          %117 = sbr.rel (%p115) target = $region28
        $region27: #{tpu_custom_call.1} parent=23 // pred_region
          %119 = dma.done %s111, 128
        $region28: #{tpu_custom_call.1} parent=23 // pred_fallthru
          _
        %s120 = sand.u32 %s26, 1
        %s121 = scalar_lea.sflag [#allocation3], %s120
        %s122 = sand.u32 %s26, 1
        %s123 = smul.addr %s122, 8
        %s124 = scalar_lea.vmem [#allocation2], %s123
        %p125 = pneg %p39
        %p126 = pneg %p36
        %p127 = pneg %p65
        %p128 = pneg %p62
        %s129 = sand.u32 %s52, 1
        %s130 = scalar_lea.sflag [#allocation4], %s129
        %s131 = sand.u32 %s52, 1
        %s132 = smul.addr %s131, 8
        %s133 = scalar_lea.vmem [#allocation5], %s132
        %v134 = vld [vmem:[%s114] sm:$0xff]
        %v135 = vmul.f32 %v134, 0.1997
        %v136 = vadd.f32 %v135, 0.5002
        %v137 = vmul.f32 %v134, %v136
        %v138 = vadd.f32 %v137, 0.1992
        %139 = vst [vmem:[%s133] sm:$0xff] %v138
        %s140 = sand.u32 %s52, 1
        %s141 = scalar_lea.sflag [#allocation4], %s140
        %s142 = sand.u32 %s52, 1
        %s143 = smul.addr %s142, 8
        %s144 = scalar_lea.vmem [#allocation5], %s143
        // Predicated region
        $region29: #{tpu_custom_call.1} parent=23 // pred_check
          %p145 = pneg %p62
        $region30: #{tpu_custom_call.1} parent=23 // pred_check_branch
          %147 = sbr.rel (%p145) target = $region32
        $region31: #{tpu_custom_call.1} parent=23 // pred_region
          %149 = vsyncadd %s141, 0
          %s150 = smul.addr %s18, 8
          %s151 = scalar_lea.hbm %s1, %s150
          %s153 = sshll.u32 %s144, 4
          %s154 = int_to_ptr.vmem [resolvable:$true] %s153
          %s155 = sshll.u32 %s151, 4
          %s156 = int_to_ptr.hbm [resolvable:$true] %s155
          %158 = dma.vmem_to_hbm [thread:$0]  %s154, 128, %s156, %s141
        $region32: #{tpu_custom_call.1} parent=23 // pred_fallthru
          _
      $region24: #{tpu_custom_call.1} parent=5 // pred_fallthru
        _
      %p159 = scmp.le.s32.totalorder 2, %s13
      // Predicated region
      $region33: #{tpu_custom_call.1} parent=5 // pred_check
        %p160 = pneg %p159
      $region34: #{tpu_custom_call.1} parent=5 // pred_check_branch
        %162 = sbr.rel (%p160) target = $region36
      $region35: #{tpu_custom_call.1} parent=5 // pred_region
        %s163 = ssub.s32 %s13, 2
        // Predicated region
        $region37: #{tpu_custom_call.1} parent=35 // pred_check
          %p164 = pneg %p68
        $region38: #{tpu_custom_call.1} parent=35 // pred_check_branch
          %166 = sbr.rel (%p164) target = $region40
        $region39: #{tpu_custom_call.1} parent=35 // pred_region
          %s167 = sand.u32 %s53, 1
          %s168 = scalar_lea.sflag [#allocation4], %s167
          %s169 = sand.u32 %s53, 1
          %s170 = smul.addr %s169, 8
          %s171 = scalar_lea.vmem [#allocation5], %s170
          %173 = dma.done %s168, 128
        $region40: #{tpu_custom_call.1} parent=35 // pred_fallthru
          _
      $region36: #{tpu_custom_call.1} parent=5 // pred_fallthru
        _
    $region6: #{tpu_custom_call.1} parent=1 // loop_footer
      %s17 = sadd.s32 1, %s13
    $region7: #{tpu_custom_call.1} parent=1 // loop_footer_branch
      %12 = sbr.rel target = $region3
    $region8: #{tpu_custom_call.1} parent=1 // loop_exit
      _
    %174 = vsyncpa [#allocation3], 1
    %s175 = scalar_lea.sflag [#allocation3], 1
    %176 = vsyncpa %s175, 1
    %177 = vsyncpa [#allocation4], 1
    %s178 = scalar_lea.sflag [#allocation4], 1
    %179 = vsyncpa %s178, 1

</llo_original>
